<compile_context>
chip_gen: v7x
topology: tpu7x:2x2x1
jax: 0.10.0
libtpu: 0.0.40
codegen_flags: <defaults>
</compile_context>

<pallas_src>
import functools

import jax
import jax.numpy as jnp
from jax.experimental import pallas as pl
from jax.experimental.pallas import tpu as pltpu


def _focal_partial_kernel(x_ref, t_ref, o_ref, acc_ref, *,
                          n_rows, tile_rows, tiles_per_par):
    """Accumulate sum(-bce) over this parallel slot's row-tile range.

    grid = (n_parallel, tiles_per_par); axis 0 is 'parallel' (megacore),
    axis 1 is the sequential reduction over row tiles.
    """
    p = pl.program_id(0)
    i = pl.program_id(1)

    @pl.when(i == 0)
    def _init():
        acc_ref[...] = jnp.zeros_like(acc_ref)

    x = x_ref[...].astype(jnp.float32)
    t = t_ref[...].astype(jnp.float32)

    # Numerically stable BCE-with-logits (same formula PyTorch uses):
    #   bce = max(x, 0) - x*t + log(1 + exp(-|x|));   logpt = -bce
    neg_bce = -(jnp.maximum(x, 0.0) - x * t + jnp.log1p(jnp.exp(-jnp.abs(x))))

    # Mask rows past the true end of the array (cdiv grid / clamped blocks).
    # Padding is not neutral for BCE, so contributions are masked explicitly.
    row_start = (p * tiles_per_par + i) * tile_rows
    row_ids = jax.lax.broadcasted_iota(jnp.int32, (tile_rows, x.shape[-1]), 0)
    valid = (row_ids + row_start) < n_rows

    # Tile-shaped VMEM accumulator: hot loop stays on the VPU; the single
    # cross-lane/cross-sublane reduce happens once in the epilogue below.
    acc_ref[...] += jnp.where(valid, neg_bce, 0.0)

    @pl.when(i == pl.num_programs(1) - 1)
    def _finalize():
        s = jnp.sum(acc_ref[...])
        o_ref[...] = jnp.broadcast_to(s, o_ref.shape).astype(jnp.float32)


def _pick_tile_rows(n, c, x_itemsize, t_itemsize, target_tile_bytes):
    """Pick a row-tile size from the padded VMEM footprint of x + t + f32 acc."""
    c_pad = ((c + 127) // 128) * 128          # VMEM lane dim pads to 128
    per_row = c_pad * (x_itemsize + t_itemsize + 4)
    tr = max(8, (int(target_tile_bytes) // per_row) // 8 * 8)
    n_pad = ((n + 7) // 8) * 8                # never bigger than (padded) N
    return int(min(tr, n_pad))


def focal_loss(inputs, target, *, gamma=1.0, balance=0.75, weight=None,
               tile_rows=None, n_parallel=2,
               target_tile_bytes=6 * 1024 * 1024):
    """Pallas implementation of FocalLoss.forward (weight=None path)."""
    # TODO(synk): optional per-element `weight` reweighting (module default is
    # weight=None) is not implemented.
    assert weight is None, "weight is not supported (module default is None)"
    assert inputs.shape == target.shape

    if inputs.ndim == 1:
        x2 = inputs.reshape(1, -1)
        t2 = target.reshape(1, -1)
    else:
        x2 = inputs.reshape(-1, inputs.shape[-1])
        t2 = target.reshape(-1, target.shape[-1])
    n, c = x2.shape

    if tile_rows is None:
        tr = _pick_tile_rows(n, c, x2.dtype.itemsize, t2.dtype.itemsize,
                             target_tile_bytes)
    else:
        tr = int(tile_rows)
        assert tr > 0 and tr % 8 == 0, "tile_rows must be a multiple of 8"

    n_blocks = pl.cdiv(n, tr)
    n_par = max(1, min(int(n_parallel), n_blocks))
    tiles_per_par = pl.cdiv(n_blocks, n_par)
    last_block = n_blocks - 1

    def in_map(p, i):
        # Blocks past the end of the array (ragged split across parallel
        # slots) are clamped to the last valid block; their rows are fully
        # masked out inside the kernel.
        return (jnp.minimum(p * tiles_per_par + i, last_block), 0)

    kernel = functools.partial(
        _focal_partial_kernel,
        n_rows=n, tile_rows=tr, tiles_per_par=tiles_per_par,
    )

    partials = pl.pallas_call(
        kernel,
        out_shape=jax.ShapeDtypeStruct((n_par, 8, 128), jnp.float32),
        grid_spec=pltpu.PrefetchScalarGridSpec(
            num_scalar_prefetch=0,
            grid=(n_par, tiles_per_par),
            in_specs=[
                pl.BlockSpec((tr, c), in_map),
                pl.BlockSpec((tr, c), in_map),
            ],
            out_specs=pl.BlockSpec((1, 8, 128), lambda p, i: (p, 0, 0)),
            scratch_shapes=[pltpu.VMEM((tr, c), jnp.float32)],
        ),
        compiler_params=pltpu.CompilerParams(
            dimension_semantics=("parallel", "arbitrary"),
            vmem_limit_bytes=32 * 1024 * 1024,
        ),
    )(x2, t2)

    # Tiny scalar epilogue in plain JAX (cross-core combine + focal math).
    logpt = jnp.sum(partials[:, 0, 0]) / jnp.float32(n * c)
    pt = jnp.exp(logpt)
    focal = -((1.0 - pt) ** jnp.float32(gamma)) * logpt
    return jnp.float32(balance) * focal


def focal_loss_ref(inputs, target, *, gamma=1.0, balance=0.75):
    """Pure-JAX reference mirroring the PyTorch module."""
    x = inputs.astype(jnp.float32)
    t = target.astype(jnp.float32)
    bce = jnp.maximum(x, 0.0) - x * t + jnp.log1p(jnp.exp(-jnp.abs(x)))
    logpt = jnp.mean(-bce)
    pt = jnp.exp(logpt)
    focal = -((1.0 - pt) ** gamma) * logpt
    return balance * focal


if __name__ == "__main__":
    key = jax.random.PRNGKey(0)
    k1, k2 = jax.random.split(key)

    # Small ECG-style multi-label shapes: 50 samples x 71 class logits.  N is
    # deliberately not a multiple of the tile, and we pass an explicit tiny
    # tile_rows + n_parallel=2 so the multi-tile accumulation, parallel split,
    # block clamping, and tail-masking paths all run even at this small size.
    N, C = 50, 71
    logits = jax.random.normal(k1, (N, C), dtype=jnp.float32)
    labels = (jax.random.uniform(k2, (N, C)) > 0.5).astype(jnp.float32)

    out = focal_loss(logits, labels, gamma=1.0, balance=0.75,
                     tile_rows=8, n_parallel=2)
    out = jax.block_until_ready(out)

    ref = focal_loss_ref(logits, labels, gamma=1.0, balance=0.75)
    assert jnp.allclose(out, ref, atol=1e-5, rtol=1e-5), (out, ref)

    print("KERNEL_OK")
</pallas_src>

<mosaic_0001>
module attributes {stable_mosaic.version = 11 : i64} {
  func.func @_focal_partial_kernel(%arg0: i32, %arg1: i32, %arg2: memref<8x71xf32, #tpu.memory_space<vmem>>, %arg3: memref<8x71xf32, #tpu.memory_space<vmem>>, %arg4: memref<1x8x128xf32, #tpu.memory_space<vmem>>, %arg5: memref<8x71xf32, #tpu.memory_space<vmem>>) attributes {dimension_semantics = [#tpu.dimension_semantics<parallel>, #tpu.dimension_semantics<arbitrary>], iteration_bounds = array<i64: 2, 4>, scalar_prefetch = 0 : i64, scratch_operands = 1 : i64, tpu.core_type = #tpu.core_type<tc>, window_params = [{transform_indices = @transform_0, window_bounds = array<i64: 8, 71>}, {transform_indices = @transform_1, window_bounds = array<i64: 8, 71>}, {transform_indices = @transform_2, window_bounds = array<i64: 1, 8, 128>}]} {
    %c0_i32 = arith.constant 0 : i32
    %0 = arith.cmpi eq, %arg1, %c0_i32 : i32
    %1 = arith.extui %0 : i1 to i32
    %c0_i32_0 = arith.constant 0 : i32
    %2 = arith.cmpi ne, %1, %c0_i32_0 : i32
    scf.if %2 {
      %cst_12 = arith.constant 0.000000e+00 : f32
      %33 = vector.broadcast %cst_12 : f32 to vector<8x71xf32>
      %c0_13 = arith.constant 0 : index
      %c0_14 = arith.constant 0 : index
      %34 = vector.load %arg5[%c0_13, %c0_14] : memref<8x71xf32, #tpu.memory_space<vmem>>, vector<8x71xf32>
      tpu.vector_store %arg5[%c0_13, %c0_14], %33 {strides = array<i32>} : memref<8x71xf32, #tpu.memory_space<vmem>>, vector<8x71xf32>,
    } else {
    }
    %c0 = arith.constant 0 : index
    %c0_1 = arith.constant 0 : index
    %3 = vector.load %arg2[%c0, %c0_1] : memref<8x71xf32, #tpu.memory_space<vmem>>, vector<8x71xf32>
    %c0_2 = arith.constant 0 : index
    %c0_3 = arith.constant 0 : index
    %4 = vector.load %arg3[%c0_2, %c0_3] : memref<8x71xf32, #tpu.memory_space<vmem>>, vector<8x71xf32>
    %cst = arith.constant 0.000000e+00 : f32
    %5 = vector.broadcast %cst : f32 to vector<8x71xf32>
    %6 = arith.maximumf %3, %5 : vector<8x71xf32>
    %7 = arith.mulf %3, %4 : vector<8x71xf32>
    %8 = arith.subf %6, %7 : vector<8x71xf32>
    %9 = math.absf %3 : vector<8x71xf32>
    %cst_4 = arith.constant 0.000000e+00 : f32
    %10 = vector.broadcast %cst_4 : f32 to vector<8x71xf32>
    %11 = arith.subf %10, %9 : vector<8x71xf32>
    %12 = math.exp %11 : vector<8x71xf32>
    %13 = math.log1p %12 : vector<8x71xf32>
    %14 = arith.addf %8, %13 : vector<8x71xf32>
    %cst_5 = arith.constant 0.000000e+00 : f32
    %15 = vector.broadcast %cst_5 : f32 to vector<8x71xf32>
    %16 = arith.subf %15, %14 : vector<8x71xf32>
    %c4_i32 = arith.constant 4 : i32
    %17 = arith.muli %arg0, %c4_i32 : i32
    %18 = arith.addi %17, %arg1 : i32
    %c8_i32 = arith.constant 8 : i32
    %19 = arith.muli %18, %c8_i32 : i32
    %20 = tpu.iota {dimensions = array<i32: 0>} : vector<8x71xi32>
    %21 = vector.broadcast %19 : i32 to vector<8x71xi32>
    %22 = arith.addi %20, %21 : vector<8x71xi32>
    %c50_i32 = arith.constant 50 : i32
    %23 = vector.broadcast %c50_i32 : i32 to vector<8x71xi32>
    %24 = arith.cmpi slt, %22, %23 : vector<8x71xi32>
    %c0_6 = arith.constant 0 : index
    %c0_7 = arith.constant 0 : index
    %25 = vector.load %arg5[%c0_6, %c0_7] : memref<8x71xf32, #tpu.memory_space<vmem>>, vector<8x71xf32>
    %cst_8 = arith.constant 0.000000e+00 : f32
    %26 = vector.broadcast %cst_8 : f32 to vector<8x71xf32>
    %27 = arith.select %24, %16, %26 : vector<8x71xi1>, vector<8x71xf32>
    %28 = arith.addf %25, %27 : vector<8x71xf32>
    %c0_9 = arith.constant 0 : index
    %c0_10 = arith.constant 0 : index
    %29 = vector.load %arg5[%c0_9, %c0_10] : memref<8x71xf32, #tpu.memory_space<vmem>>, vector<8x71xf32>
    tpu.vector_store %arg5[%c0_9, %c0_10], %28 {strides = array<i32>} : memref<8x71xf32, #tpu.memory_space<vmem>>, vector<8x71xf32>,
    %c3_i32 = arith.constant 3 : i32
    %30 = arith.cmpi eq, %arg1, %c3_i32 : i32
    %31 = arith.extui %30 : i1 to i32
    %c0_i32_11 = arith.constant 0 : i32
    %32 = arith.cmpi ne, %31, %c0_i32_11 : i32
    scf.if %32 {
      %c0_12 = arith.constant 0 : index
      %c0_13 = arith.constant 0 : index
      %33 = vector.load %arg5[%c0_12, %c0_13] : memref<8x71xf32, #tpu.memory_space<vmem>>, vector<8x71xf32>
      %34 = vector.shape_cast %33 : vector<8x71xf32> to vector<1x8x71xf32>
      %cst_14 = arith.constant dense<0.000000e+00> : vector<1xf32>
      %35 = vector.multi_reduction <add>, %34, %cst_14 [1, 2] : vector<1x8x71xf32> to vector<1xf32>
      %36 = vector.shape_cast %35 : vector<1xf32> to vector<1x1x1xf32>
      %37 = vector.extract %36[0, 0, 0] : f32 from vector<1x1x1xf32>
      %38 = vector.broadcast %37 : f32 to vector<1x8x128xf32>
      %c0_15 = arith.constant 0 : index
      %c0_16 = arith.constant 0 : index
      %c0_17 = arith.constant 0 : index
      %39 = vector.load %arg4[%c0_15, %c0_16, %c0_17] : memref<1x8x128xf32, #tpu.memory_space<vmem>>, vector<1x8x128xf32>
      tpu.vector_store %arg4[%c0_15, %c0_16, %c0_17], %38 {strides = array<i32>} : memref<1x8x128xf32, #tpu.memory_space<vmem>>, vector<1x8x128xf32>,
    } else {
    }
    return
  }
  func.func @transform_0(%arg0: i32, %arg1: i32) -> (i32, i32) {
    %c4_i32 = arith.constant 4 : i32
    %0 = arith.muli %arg0, %c4_i32 : i32
    %1 = arith.addi %0, %arg1 : i32
    %c6_i32 = arith.constant 6 : i32
    %2 = arith.minsi %1, %c6_i32 : i32
    %c0_i32 = arith.constant 0 : i32
    %c0_i32_0 = arith.constant 0 : i32
    return %2, %c0_i32 : i32, i32
  }
  func.func @transform_1(%arg0: i32, %arg1: i32) -> (i32, i32) {
    %c4_i32 = arith.constant 4 : i32
    %0 = arith.muli %arg0, %c4_i32 : i32
    %1 = arith.addi %0, %arg1 : i32
    %c6_i32 = arith.constant 6 : i32
    %2 = arith.minsi %1, %c6_i32 : i32
    %c0_i32 = arith.constant 0 : i32
    %c0_i32_0 = arith.constant 0 : i32
    return %2, %c0_i32 : i32, i32
  }
  func.func @transform_2(%arg0: i32, %arg1: i32) -> (i32, i32, i32) {
    %c0_i32 = arith.constant 0 : i32
    %c0_i32_0 = arith.constant 0 : i32
    %c0_i32_1 = arith.constant 0 : i32
    return %arg0, %c0_i32, %c0_i32_0 : i32, i32, i32
  }
}

</mosaic_0001>

<llo_original>
// kernel: tpu_custom_call.1
$region0: #{tpu_custom_call.1}
  #allocation0 [shape = 'u32[]', space=smem, size = 0x4, offset = 0x4, fixed_abs, tag = 'smem constant byte address 0x4 - core index']
  #allocation1 [shape = 'u32[144,128]{1,0:T(1,128)}', space=vmem, size = 0x12000, scoped, tag = 'internal scratch']
  #allocation2 [shape = 'f32[8,71]{1,0:T(8,128)}', space=vmem, size = 0x1000, scoped, tag = 'scratch operand']
  %s0 = inlined_call_operand.hbm [shape: f32[50,71], index: 0, kind: input, shape index: {}]
  %s1 = inlined_call_operand.hbm [shape: f32[50,71], index: 1, kind: input, shape index: {}]
  %s2 = inlined_call_operand.hbm [shape: f32[2,8,128], index: 2, kind: output, shape index: {}]
  %s3 = sld [smem:[#allocation0]]
  $region57: #{tpu_custom_call.1} parent=0
    _
  %s5 = ssub.s32 1, %s3
  %s6 = scalar_select 0, %s5, %s3
  $region1: #{tpu_custom_call.1} parent=0
    #allocation3 [shape = 'u8[8192]{0}', space=vmem, size = 0x2000, scoped, tag = 'input window, operand 0']
    #allocation4 [shape = 's32[2]{0}', space=sflag, size = 0x8, scoped, tag = 'scoped memory for tpu_custom_call.1']
    #allocation5 [shape = 's32[2]{0}', space=sflag, size = 0x8, scoped, tag = 'scoped memory for tpu_custom_call.1']
    #allocation6 [shape = 'u8[8192]{0}', space=vmem, size = 0x2000, scoped, tag = 'input window, operand 1']
    #allocation7 [shape = 's32[2]{0}', space=sflag, size = 0x8, scoped, tag = 'scoped memory for tpu_custom_call.1']
    #allocation8 [shape = 'u8[8192]{0}', space=vmem, size = 0x2000, scoped, tag = 'output window, operand 0']
    %7 = vsyncpa [#allocation4], 0
    %s8 = scalar_lea.sflag [#allocation4], 1
    %9 = vsyncpa %s8, 0
    %10 = vsyncpa [#allocation7], 0
    %s11 = scalar_lea.sflag [#allocation7], 1
    %12 = vsyncpa %s11, 0
    %13 = vsyncpa [#allocation5], 0
    %s14 = scalar_lea.sflag [#allocation5], 1
    %15 = vsyncpa %s14, 0
    loop: start=0, step=1, limit=10
    $region2: #{tpu_custom_call.1} parent=1 // loop_pre_header
      _
    $region3: #{tpu_custom_call.1} parent=1 // loop_header
      %s17 = sphi 0, %s21
      %p18 = scmp.ge.s32.totalorder %s17, 10
      %s24 = sphi 0, %s36
      %s25 = sphi 0, %s32
      %s26 = sphi 0, %s24
      %s27 = sphi 0, %s25
      %s28 = sphi 0, %s26
      %s29 = sphi 0, %s27
      %s47 = sphi 0, %s49
      %s50 = sphi 0, %s47
      %s51 = sphi 0, %s50
      %s67 = sphi 0, %s51
      %s81 = sphi 0, %s83
      %s84 = sphi 0, %s81
      %s85 = sphi 0, %s84
      %s101 = sphi 0, %s85
      %s107 = sphi 0, %s109
      %s110 = sphi 0, %s107
      %s111 = sphi 0, %s110
      %s127 = sphi 0, %s111
    $region4: #{tpu_custom_call.1} parent=1 // loop_header_branch
      %20 = sbr.rel (%p18) target = $region8
    $region5: #{tpu_custom_call.1} parent=1 // loop_body
      %s22 = ssub.s32 %s17, 1
      %s23 = ssub.s32 %s17, 2
      %s30 = sadd.s32 1, %s25
      %p31 = scmp.ge.s32.totalorder %s30, 4
      %s32 = scalar_select %p31, 0, %s30
      %s33 = sadd.s32 1, %s24
      %s34 = scalar_select %p31, %s33, %s24
      %p35 = scmp.ge.s32.totalorder %s34, 2
      %s36 = scalar_select %p35, 0, %s34
      %s37 = smul.u32 %s24, 4
      %s38 = sadd.s32 %s37, %s25
      %p39 = scmp.lt.s32.totalorder %s38, 6
      %s40 = scalar_select %p39, %s38, 6
      %s41 = smul.u32 %s36, 4
      %s42 = sadd.s32 %s41, %s32
      %p43 = scmp.lt.s32.totalorder %s42, 6
      %s44 = scalar_select %p43, %s42, 6
      %s45 = ssub.s32 %s40, %s44
      %p46 = scmp.eq.s32.totalorder %s45, 0
      %s48 = sadd.s32 %s47, 1
      %s49 = scalar_select %p46, %s47, %s48
      %p52 = pneg %p46
      %p53 = scmp.eq.s32.totalorder %s17, 7
      %p54 = por %p52, %p53
      %p55 = scmp.ne.s32.totalorder %s47, %s50
      %p56 = scmp.eq.s32.totalorder %s17, 0
      %p57 = por %p55, %p56
      %p58 = scmp.ne.s32.totalorder %s47, %s50
      %p59 = scmp.eq.s32.totalorder %s22, 7
      %p60 = por %p58, %p59
      %p61 = scmp.ne.s32.totalorder %s50, %s51
      %p62 = scmp.eq.s32.totalorder %s22, 0
      %p63 = por %p61, %p62
      %p64 = scmp.ne.s32.totalorder %s50, %s51
      %p65 = scmp.eq.s32.totalorder %s23, 7
      %p66 = por %p64, %p65
      %p68 = scmp.ne.s32.totalorder %s51, %s67
      %p69 = scmp.eq.s32.totalorder %s23, 0
      %p70 = por %p68, %p69
      %s71 = smul.u32 %s24, 4
      %s72 = sadd.s32 %s71, %s25
      %p73 = scmp.lt.s32.totalorder %s72, 6
      %s74 = scalar_select %p73, %s72, 6
      %s75 = smul.u32 %s36, 4
      %s76 = sadd.s32 %s75, %s32
      %p77 = scmp.lt.s32.totalorder %s76, 6
      %s78 = scalar_select %p77, %s76, 6
      %s79 = ssub.s32 %s74, %s78
      %p80 = scmp.eq.s32.totalorder %s79, 0
      %s82 = sadd.s32 %s81, 1
      %s83 = scalar_select %p80, %s81, %s82
      %p86 = pneg %p80
      %p87 = scmp.eq.s32.totalorder %s17, 7
      %p88 = por %p86, %p87
      %p89 = scmp.ne.s32.totalorder %s81, %s84
      %p90 = scmp.eq.s32.totalorder %s17, 0
      %p91 = por %p89, %p90
      %p92 = scmp.ne.s32.totalorder %s81, %s84
      %p93 = scmp.eq.s32.totalorder %s22, 7
      %p94 = por %p92, %p93
      %p95 = scmp.ne.s32.totalorder %s84, %s85
      %p96 = scmp.eq.s32.totalorder %s22, 0
      %p97 = por %p95, %p96
      %p98 = scmp.ne.s32.totalorder %s84, %s85
      %p99 = scmp.eq.s32.totalorder %s23, 7
      %p100 = por %p98, %p99
      %p102 = scmp.ne.s32.totalorder %s85, %s101
      %p103 = scmp.eq.s32.totalorder %s23, 0
      %p104 = por %p102, %p103
      %s105 = ssub.s32 %s24, %s36
      %p106 = scmp.eq.s32.totalorder %s105, 0
      %s108 = sadd.s32 %s107, 1
      %s109 = scalar_select %p106, %s107, %s108
      %p112 = pneg %p106
      %p113 = scmp.eq.s32.totalorder %s17, 7
      %p114 = por %p112, %p113
      %p115 = scmp.ne.s32.totalorder %s107, %s110
      %p116 = scmp.eq.s32.totalorder %s17, 0
      %p117 = por %p115, %p116
      %p118 = scmp.ne.s32.totalorder %s107, %s110
      %p119 = scmp.eq.s32.totalorder %s22, 7
      %p120 = por %p118, %p119
      %p121 = scmp.ne.s32.totalorder %s110, %s111
      %p122 = scmp.eq.s32.totalorder %s22, 0
      %p123 = por %p121, %p122
      %p124 = scmp.ne.s32.totalorder %s110, %s111
      %p125 = scmp.eq.s32.totalorder %s23, 7
      %p126 = por %p124, %p125
      %p128 = scmp.ne.s32.totalorder %s111, %s127
      %p129 = scmp.eq.s32.totalorder %s23, 0
      %p130 = por %p128, %p129
      %p131 = scmp.le.s32.totalorder 1, %s17
      %p132 = scmp.lt.s32.totalorder %s17, 9
      %p133 = pnand %p131, %p132
      %p134 = pneg %p133
      // Predicated region
      $region9: #{tpu_custom_call.1} parent=5 // pred_check
        _
      $region10: #{tpu_custom_call.1} parent=5 // pred_check_branch
        %136 = sbr.rel (%p133) target = $region12
      $region11: #{tpu_custom_call.1} parent=5 // pred_region
        %s137 = ssub.s32 %s17, 1
      $region12: #{tpu_custom_call.1} parent=5 // pred_fallthru
        _
      %p138 = scmp.lt.s32.totalorder %s17, 8
      // Predicated region
      $region13: #{tpu_custom_call.1} parent=5 // pred_check
        %p139 = pneg %p138
      $region14: #{tpu_custom_call.1} parent=5 // pred_check_branch
        %141 = sbr.rel (%p139) target = $region16
      $region15: #{tpu_custom_call.1} parent=5 // pred_region
        // Predicated region
        $region17: #{tpu_custom_call.1} parent=15 // pred_check
          %p142 = pneg %p57
        $region18: #{tpu_custom_call.1} parent=15 // pred_check_branch
          %144 = sbr.rel (%p142) target = $region20
        $region19: #{tpu_custom_call.1} parent=15 // pred_region
          %s145 = sand.u32 %s47, 1
          %s146 = scalar_lea.sflag [#allocation4], %s145
          %s147 = sand.u32 %s47, 1
          %s148 = smul.addr %s147, 8
          %s149 = scalar_lea.vmem [#allocation3], %s148
          %s150 = smul.u32 %s24, 4
          %s151 = sadd.s32 %s150, %s25
          %p152 = scmp.lt.s32.totalorder %s151, 6
          %s153 = scalar_select %p152, %s151, 6
          %s155 = ssub.s32 128, 128
          %156 = vsyncadd %s146, %s155
          %s157 = smul.addr %s153, 128
          %s158 = scalar_lea.hbm %s0, %s157
          %s160 = sshll.u32 %s149, 4
          %s161 = int_to_ptr.vmem [resolvable:$true] %s160
          %163 = dma.hbm_to_vmem [thread:$0]  %s158, 128, %s161, %s146
        $region20: #{tpu_custom_call.1} parent=15 // pred_fallthru
          _
        // Predicated region
        $region21: #{tpu_custom_call.1} parent=15 // pred_check
          %p164 = pneg %p91
        $region22: #{tpu_custom_call.1} parent=15 // pred_check_branch
          %166 = sbr.rel (%p164) target = $region24
        $region23: #{tpu_custom_call.1} parent=15 // pred_region
          %s167 = sand.u32 %s81, 1
          %s168 = scalar_lea.sflag [#allocation7], %s167
          %s169 = sand.u32 %s81, 1
          %s170 = smul.addr %s169, 8
          %s171 = scalar_lea.vmem [#allocation6], %s170
          %s172 = smul.u32 %s24, 4
          %s173 = sadd.s32 %s172, %s25
          %p174 = scmp.lt.s32.totalorder %s173, 6
          %s175 = scalar_select %p174, %s173, 6
          %s177 = ssub.s32 128, 128
          %178 = vsyncadd %s168, %s177
          %s179 = smul.addr %s175, 128
          %s180 = scalar_lea.hbm %s1, %s179
          %s182 = sshll.u32 %s171, 4
          %s183 = int_to_ptr.vmem [resolvable:$true] %s182
          %185 = dma.hbm_to_vmem [thread:$0]  %s180, 128, %s183, %s168
        $region24: #{tpu_custom_call.1} parent=15 // pred_fallthru
          _
      $region16: #{tpu_custom_call.1} parent=5 // pred_fallthru
        _
      %p186 = scmp.le.s32.totalorder 1, %s17
      %p187 = scmp.lt.s32.totalorder %s17, 9
      %p188 = pnand %p186, %p187
      %p189 = pneg %p188
      // Predicated region
      $region25: #{tpu_custom_call.1} parent=5 // pred_check
        _
      $region26: #{tpu_custom_call.1} parent=5 // pred_check_branch
        %191 = sbr.rel (%p188) target = $region28
      $region27: #{tpu_custom_call.1} parent=5 // pred_region
        %s192 = ssub.s32 %s17, 1
        %s193 = sand.u32 %s50, 1
        %s194 = scalar_lea.sflag [#allocation4], %s193
        %s195 = sand.u32 %s50, 1
        %s196 = smul.addr %s195, 8
        %s197 = scalar_lea.vmem [#allocation3], %s196
        // Predicated region
        $region29: #{tpu_custom_call.1} parent=27 // pred_check
          %p198 = pneg %p63
        $region30: #{tpu_custom_call.1} parent=27 // pred_check_branch
          %200 = sbr.rel (%p198) target = $region32
        $region31: #{tpu_custom_call.1} parent=27 // pred_region
          %201 = dma.done %s194, 128
        $region32: #{tpu_custom_call.1} parent=27 // pred_fallthru
          _
        %s202 = sand.u32 %s84, 1
        %s203 = scalar_lea.sflag [#allocation7], %s202
        %s204 = sand.u32 %s84, 1
        %s205 = smul.addr %s204, 8
        %s206 = scalar_lea.vmem [#allocation6], %s205
        // Predicated region
        $region33: #{tpu_custom_call.1} parent=27 // pred_check
          %p207 = pneg %p97
        $region34: #{tpu_custom_call.1} parent=27 // pred_check_branch
          %209 = sbr.rel (%p207) target = $region36
        $region35: #{tpu_custom_call.1} parent=27 // pred_region
          %210 = dma.done %s203, 128
        $region36: #{tpu_custom_call.1} parent=27 // pred_fallthru
          _
        %s211 = sand.u32 %s50, 1
        %s212 = scalar_lea.sflag [#allocation4], %s211
        %s213 = sand.u32 %s50, 1
        %s214 = smul.addr %s213, 8
        %s215 = scalar_lea.vmem [#allocation3], %s214
        %p216 = pneg %p63
        %p217 = pneg %p60
        %s218 = sand.u32 %s84, 1
        %s219 = scalar_lea.sflag [#allocation7], %s218
        %s220 = sand.u32 %s84, 1
        %s221 = smul.addr %s220, 8
        %s222 = scalar_lea.vmem [#allocation6], %s221
        %p223 = pneg %p97
        %p224 = pneg %p94
        %p225 = pneg %p123
        %p226 = pneg %p120
        %s227 = sand.u32 %s110, 1
        %s228 = scalar_lea.sflag [#allocation5], %s227
        %s229 = sand.u32 %s110, 1
        %s230 = smul.addr %s229, 8
        %s231 = scalar_lea.vmem [#allocation8], %s230
        %s232 = smul.u32 %s26, 4
        %s233 = sadd.s32 %s232, %s27
        %p234 = scmp.lt.s32.totalorder %s233, 6
        %s235 = scalar_select %p234, %s233, 6
        %s236 = smul.u32 %s26, 4
        %s237 = sadd.s32 %s236, %s27
        %p238 = scmp.lt.s32.totalorder %s237, 6
        %s239 = scalar_select %p238, %s237, 6
        %p240 = scmp.eq.s32.totalorder %s27, 0
        // Predicated region
        $region37: #{tpu_custom_call.1} parent=27 // pred_check
          %p241 = pneg %p240
        $region38: #{tpu_custom_call.1} parent=27 // pred_check_branch
          %243 = sbr.rel (%p241) target = $region40
        $region39: #{tpu_custom_call.1} parent=27 // pred_region
          %vm244 = vcmask 580608
          %245 = vst.msk [vmem:[#allocation2] sm:$0xff] %vm244, 0.0
        $region40: #{tpu_custom_call.1} parent=27 // pred_fallthru
          _
        %v246 = vld [vmem:[%s197] sm:$0xff]
        %v247 = vld [vmem:[%s206] sm:$0xff]
        %v248 = vmax.f32 %v246, 0.0
        %v249 = vmul.f32 %v246, %v247
        %v250 = vsub.f32 %v248, %v249
        %v251 = vand.u32 2147483647, %v246
        %v252 = vsub.f32 0.0, %v251
        %v253 = vmul.f32 %v252, 1.442695
        %v254 = vpow.pop %v253
        %v255 = vadd.f32 %v254, 1.0
        %v256 = vlog2.pop %v255
        %v257 = vmul.f32 %v256, 0.6931472
        %v258 = vmul.f32 -0.5, %v254
        %v259 = vadd.f32 %v258, 1.0
        %v260 = vmul.f32 %v259, %v254
        %v261 = vand.u32 2147483647, %v254
        %vm262 = vcmp.lt.f32.partialorder %v261, 0.0004427343
        %v263 = vsel %vm262, %v260, %v257
        %v264 = vadd.f32 %v250, %v263
        %v265 = vsub.f32 0.0, %v264
        %s266 = smul.u32 %s26, 4
        %s267 = sadd.s32 %s266, %s27
        %s268 = smul.u32 %s267, 8
        %v269 = vlaneseq
        %v270 = vshrl.u32 %v269, 7
        %v271 = vstv %s268
        %v272 = vadd.s32 %v270, %v271
        %vm273 = vcmp.lt.s32.totalorder %v272, 50
        %v274 = vld [vmem:[#allocation2] sm:$0xff]
        %v275 = vsel %vm273, %v265, 0.0
        %v276 = vadd.f32 %v274, %v275
        %vm277 = vcmask 580608
        %278 = vst.msk [vmem:[#allocation2] sm:$0xff] %vm277, %v276
        %p279 = scmp.eq.s32.totalorder %s27, 3
        // Predicated region
        $region41: #{tpu_custom_call.1} parent=27 // pred_check
          %p280 = pneg %p279
        $region42: #{tpu_custom_call.1} parent=27 // pred_check_branch
          %282 = sbr.rel (%p280) target = $region44
        $region43: #{tpu_custom_call.1} parent=27 // pred_region
          %v283 = vld [vmem:[#allocation2] sm:$0xff]
          %v284 = vsel %vm277, %v283, 0.0
          %285 = vadd.xlane.f32.xlu0 %v284
          %v286 = vpop.xlane.xlu0 %285
          %v287 = vrot.slane %v286, 4
          %v288 = vadd.f32 %v286, %v287
          %v289 = vrot.slane %v288, 2
          %v290 = vadd.f32 %v288, %v289
          %v291 = vrot.slane %v290, 1
          %v292 = vadd.f32 %v290, %v291
          %s293 = vtos %v292
          %v294 = vstv %s293
          %295 = vst [vmem:[%s231] sm:$0xff] %v294
        $region44: #{tpu_custom_call.1} parent=27 // pred_fallthru
          _
        %s296 = sand.u32 %s110, 1
        %s297 = scalar_lea.sflag [#allocation5], %s296
        %s298 = sand.u32 %s110, 1
        %s299 = smul.addr %s298, 8
        %s300 = scalar_lea.vmem [#allocation8], %s299
        // Predicated region
        $region45: #{tpu_custom_call.1} parent=27 // pred_check
          %p301 = pneg %p120
        $region46: #{tpu_custom_call.1} parent=27 // pred_check_branch
          %303 = sbr.rel (%p301) target = $region48
        $region47: #{tpu_custom_call.1} parent=27 // pred_region
          %s305 = ssub.s32 128, 128
          %306 = vsyncadd %s297, %s305
          %s307 = smul.addr %s26, 128
          %s308 = scalar_lea.hbm %s2, %s307
          %s310 = sshll.u32 %s300, 4
          %s311 = int_to_ptr.vmem [resolvable:$true] %s310
          %313 = dma.vmem_to_hbm [thread:$0]  %s311, 128, %s308, %s297
        $region48: #{tpu_custom_call.1} parent=27 // pred_fallthru
          _
      $region28: #{tpu_custom_call.1} parent=5 // pred_fallthru
        _
      %p314 = scmp.le.s32.totalorder 2, %s17
      // Predicated region
      $region49: #{tpu_custom_call.1} parent=5 // pred_check
        %p315 = pneg %p314
      $region50: #{tpu_custom_call.1} parent=5 // pred_check_branch
        %317 = sbr.rel (%p315) target = $region52
      $region51: #{tpu_custom_call.1} parent=5 // pred_region
        %s318 = ssub.s32 %s17, 2
        // Predicated region
        $region53: #{tpu_custom_call.1} parent=51 // pred_check
          %p319 = pneg %p126
        $region54: #{tpu_custom_call.1} parent=51 // pred_check_branch
          %321 = sbr.rel (%p319) target = $region56
        $region55: #{tpu_custom_call.1} parent=51 // pred_region
          %s322 = sand.u32 %s111, 1
          %s323 = scalar_lea.sflag [#allocation5], %s322
          %s324 = sand.u32 %s111, 1
          %s325 = smul.addr %s324, 8
          %s326 = scalar_lea.vmem [#allocation8], %s325
          %327 = dma.done %s323, 128
        $region56: #{tpu_custom_call.1} parent=51 // pred_fallthru
          _
      $region52: #{tpu_custom_call.1} parent=5 // pred_fallthru
        _
    $region6: #{tpu_custom_call.1} parent=1 // loop_footer
      %s21 = sadd.s32 1, %s17
    $region7: #{tpu_custom_call.1} parent=1 // loop_footer_branch
      %16 = sbr.rel target = $region3
    $region8: #{tpu_custom_call.1} parent=1 // loop_exit
      _
    %328 = vsyncpa [#allocation4], 1
    %s329 = scalar_lea.sflag [#allocation4], 1
    %330 = vsyncpa %s329, 1
    %331 = vsyncpa [#allocation7], 1
    %s332 = scalar_lea.sflag [#allocation7], 1
    %333 = vsyncpa %s332, 1
    %334 = vsyncpa [#allocation5], 1
    %s335 = scalar_lea.sflag [#allocation5], 1
    %336 = vsyncpa %s335, 1

</llo_original>
